<compile_context>
chip_gen: v6e
topology: v6e:2x2x1
jax: 0.10.0
libtpu: 0.0.40
codegen_flags: <defaults>
</compile_context>

<pallas_src>
import jax
import jax.numpy as jnp
from jax.experimental import pallas as pl
from jax.experimental.pallas import tpu as pltpu


def _se_kernel(x_ref, w1_ref, w2_ref, o_ref):
    # x_ref : (TB, C, L)   a tile of batch rows
    # w1_ref: (C, H)       (in, out) layout, H = C // reduction
    # w2_ref: (H, C)       (in, out) layout
    # o_ref : (TB, C, L)
    # Squeeze: adaptive avg-pool to length 1 -> (TB, C)
    y = jnp.mean(x_ref[...].astype(jnp.float32), axis=-1)
    # Excitation: Linear -> ReLU -> Linear -> Sigmoid (tiny; left on jnp.dot).
    h = jnp.dot(y, w1_ref[...], preferred_element_type=jnp.float32)
    h = jnp.maximum(h, 0.0)
    s = jnp.dot(h, w2_ref[...], preferred_element_type=jnp.float32)
    s = jax.nn.sigmoid(s)
    # Scale: re-read x from VMEM (bounds vreg live ranges) and broadcast the
    # per-channel gate over the length dim.
    o_ref[...] = x_ref[...] * s[:, :, None].astype(o_ref.dtype)


def _pick_batch_tile(B, C, L, itemsize, budget_bytes=8 << 20):
    """Largest divisor of B whose (TB, C, L) tile stays under `budget_bytes`.

    Input + output tiles are each double-buffered by BlockSpec pipelining, so
    total VMEM use is ~4 * TB * C * L * itemsize; 8 MiB per tile keeps that
    far below even v7x's 64 MiB VMEM while giving DMA sizes large enough to
    hit the HBM roofline.
    """
    per_row = max(1, C * L * itemsize)
    tb = max(1, min(B, budget_bytes // per_row))
    while B % tb:
        tb -= 1
    return tb


def se_layer(x, w1_t, w2_t):
    """x: (B, C, L); w1_t: (C, H) and w2_t: (H, C) pre-transposed weights."""
    B, C, L = x.shape
    H = w1_t.shape[1]
    itemsize = int(jnp.dtype(x.dtype).itemsize)
    TB = _pick_batch_tile(B, C, L, itemsize)

    cost = pl.CostEstimate(
        flops=int(2 * B * (C * H + H * C) + 2 * B * C * L),
        transcendentals=int(B * C),                      # sigmoid
        bytes_accessed=int(2 * B * C * L * itemsize + (C * H + H * C) * 4),
    )
    return pl.pallas_call(
        _se_kernel,
        out_shape=jax.ShapeDtypeStruct((B, C, L), x.dtype),
        grid_spec=pltpu.PrefetchScalarGridSpec(
            num_scalar_prefetch=0,
            grid=(B // TB,),
            in_specs=[
                pl.BlockSpec((TB, C, L), lambda b: (b, 0, 0)),  # x: batch tile
                pl.BlockSpec((C, H), lambda b: (0, 0)),         # w1 resident
                pl.BlockSpec((H, C), lambda b: (0, 0)),         # w2 resident
            ],
            out_specs=pl.BlockSpec((TB, C, L), lambda b: (b, 0, 0)),
        ),
        compiler_params=pltpu.CompilerParams(
            dimension_semantics=("parallel",),   # shard batch tiles across TCs (v7x)
        ),
        cost_estimate=cost,
    )(x, w1_t, w2_t)


se_layer_jit = jax.jit(se_layer)


def make_se_params(w1_torch, w2_torch):
    """One-time (outside the per-call path) transpose of torch-layout weights
    (out_features, in_features) -> (in, out) so the kernel does plain y @ W."""
    return w1_torch.T, w2_torch.T


def se_layer_ref(x, w1_torch, w2_torch):
    """Pure-JAX reference mirroring the PyTorch module exactly."""
    y = jnp.mean(x, axis=-1)                          # (B, C)
    y = jnp.maximum(y @ w1_torch.T, 0.0)              # (B, H)
    y = jax.nn.sigmoid(y @ w2_torch.T)                # (B, C)
    return x * y[:, :, None]


if __name__ == "__main__":
    B, C, L = 4, 64, 16
    reduction = 32
    H = C // reduction  # 2

    key = jax.random.PRNGKey(0)
    kx, k1, k2 = jax.random.split(key, 3)

    x = jax.random.normal(kx, (B, C, L), dtype=jnp.float32)
    # PyTorch Linear layout: (out_features, in_features), bias=False.
    w1 = jax.random.uniform(k1, (H, C), dtype=jnp.float32,
                            minval=-(1.0 / C) ** 0.5, maxval=(1.0 / C) ** 0.5)
    w2 = jax.random.uniform(k2, (C, H), dtype=jnp.float32,
                            minval=-(1.0 / H) ** 0.5, maxval=(1.0 / H) ** 0.5)

    # Hoisted, one-time weight transpose (not in the jitted call path).
    w1_t, w2_t = make_se_params(w1, w2)

    out = se_layer_jit(x, w1_t, w2_t)
    out = jax.block_until_ready(out)

    ref = se_layer_ref(x, w1, w2)
    assert out.shape == (B, C, L)
    assert jnp.allclose(out, ref, atol=1e-5, rtol=1e-5), "mismatch vs reference"

    print("KERNEL_OK")
</pallas_src>

<mosaic_0001>
module attributes {stable_mosaic.version = 11 : i64} {
  func.func @_se_kernel(%arg0: i32, %arg1: memref<4x64x16xf32, #tpu.memory_space<vmem>>, %arg2: memref<64x2xf32, #tpu.memory_space<vmem>>, %arg3: memref<2x64xf32, #tpu.memory_space<vmem>>, %arg4: memref<4x64x16xf32, #tpu.memory_space<vmem>>) attributes {dimension_semantics = [#tpu.dimension_semantics<parallel>], iteration_bounds = array<i64: 1>, scalar_prefetch = 0 : i64, scratch_operands = 0 : i64, tpu.core_type = #tpu.core_type<tc>, window_params = [{transform_indices = @transform_0, window_bounds = array<i64: 4, 64, 16>}, {pipeline_mode = #tpu.pipeline_mode<synchronous>, transform_indices = @transform_1, window_bounds = array<i64: 64, 2>}, {pipeline_mode = #tpu.pipeline_mode<synchronous>, transform_indices = @transform_2, window_bounds = array<i64: 2, 64>}, {transform_indices = @transform_3, window_bounds = array<i64: 4, 64, 16>}]} {
    %c0 = arith.constant 0 : index
    %c0_0 = arith.constant 0 : index
    %c0_1 = arith.constant 0 : index
    %0 = vector.load %arg1[%c0, %c0_0, %c0_1] : memref<4x64x16xf32, #tpu.memory_space<vmem>>, vector<4x64x16xf32>
    %cst = arith.constant dense<0.000000e+00> : vector<4x64xf32>
    %1 = vector.multi_reduction <add>, %0, %cst [2] : vector<4x64x16xf32> to vector<4x64xf32>
    %cst_2 = arith.constant 1.600000e+01 : f32
    %2 = vector.broadcast %cst_2 : f32 to vector<4x64xf32>
    %3 = arith.divf %1, %2 : vector<4x64xf32>
    %c0_3 = arith.constant 0 : index
    %c0_4 = arith.constant 0 : index
    %4 = vector.load %arg2[%c0_3, %c0_4] : memref<64x2xf32, #tpu.memory_space<vmem>>, vector<64x2xf32>
    %cst_5 = arith.constant dense<0.000000e+00> : vector<4x2xf32>
    %5 = tpu.matmul %3, %4, %cst_5 {dimension_numbers = #tpu.dot_dimension_numbers<[1], [0], [0], [1], [0, 0, 1, 1], [], []>} : vector<4x64xf32>, vector<64x2xf32>, vector<4x2xf32> -> vector<4x2xf32>
    %cst_6 = arith.constant 0.000000e+00 : f32
    %6 = vector.broadcast %cst_6 : f32 to vector<4x2xf32>
    %7 = arith.maximumf %5, %6 : vector<4x2xf32>
    %c0_7 = arith.constant 0 : index
    %c0_8 = arith.constant 0 : index
    %8 = vector.load %arg3[%c0_7, %c0_8] : memref<2x64xf32, #tpu.memory_space<vmem>>, vector<2x64xf32>
    %cst_9 = arith.constant dense<0.000000e+00> : vector<4x64xf32>
    %9 = tpu.matmul %7, %8, %cst_9 {dimension_numbers = #tpu.dot_dimension_numbers<[1], [0], [0], [1], [0, 0, 1, 1], [], []>} : vector<4x2xf32>, vector<2x64xf32>, vector<4x64xf32> -> vector<4x64xf32>
    %10 = arith.negf %9 : vector<4x64xf32>
    %11 = math.exp %10 : vector<4x64xf32>
    %cst_10 = arith.constant 1.000000e+00 : f32
    %12 = vector.broadcast %cst_10 : f32 to vector<4x64xf32>
    %13 = arith.addf %12, %11 : vector<4x64xf32>
    %14 = arith.divf %12, %13 : vector<4x64xf32>
    %c0_11 = arith.constant 0 : index
    %c0_12 = arith.constant 0 : index
    %c0_13 = arith.constant 0 : index
    %15 = vector.load %arg1[%c0_11, %c0_12, %c0_13] : memref<4x64x16xf32, #tpu.memory_space<vmem>>, vector<4x64x16xf32>
    %16 = vector.shape_cast %14 : vector<4x64xf32> to vector<4x64x1xf32>
    %17 = vector.broadcast %16 : vector<4x64x1xf32> to vector<4x64x16xf32>
    %18 = arith.mulf %15, %17 : vector<4x64x16xf32>
    %c0_14 = arith.constant 0 : index
    %c0_15 = arith.constant 0 : index
    %c0_16 = arith.constant 0 : index
    %19 = vector.load %arg4[%c0_14, %c0_15, %c0_16] : memref<4x64x16xf32, #tpu.memory_space<vmem>>, vector<4x64x16xf32>
    tpu.vector_store %arg4[%c0_14, %c0_15, %c0_16], %18 {strides = array<i32>} : memref<4x64x16xf32, #tpu.memory_space<vmem>>, vector<4x64x16xf32>,
    return
  }
  func.func @transform_0(%arg0: i32) -> (i32, i32, i32) {
    %c0_i32 = arith.constant 0 : i32
    %c0_i32_0 = arith.constant 0 : i32
    %c0_i32_1 = arith.constant 0 : i32
    return %arg0, %c0_i32, %c0_i32_0 : i32, i32, i32
  }
  func.func @transform_1(%arg0: i32) -> (i32, i32) {
    %c0_i32 = arith.constant 0 : i32
    %c0_i32_0 = arith.constant 0 : i32
    %c0_i32_1 = arith.constant 0 : i32
    return %c0_i32, %c0_i32_0 : i32, i32
  }
  func.func @transform_2(%arg0: i32) -> (i32, i32) {
    %c0_i32 = arith.constant 0 : i32
    %c0_i32_0 = arith.constant 0 : i32
    %c0_i32_1 = arith.constant 0 : i32
    return %c0_i32, %c0_i32_0 : i32, i32
  }
  func.func @transform_3(%arg0: i32) -> (i32, i32, i32) {
    %c0_i32 = arith.constant 0 : i32
    %c0_i32_0 = arith.constant 0 : i32
    %c0_i32_1 = arith.constant 0 : i32
    return %arg0, %c0_i32, %c0_i32_0 : i32, i32, i32
  }
}

</mosaic_0001>

<llo_original>
// kernel: se_layer.1
$region0: #{se_layer.1}
  #allocation0 [shape = 'u32[]', space=smem, size = 0x4, offset = 0x4, fixed_abs, tag = 'smem constant byte address 0x4 - core index']
  #allocation1 [shape = 'u32[144,128]{1,0:T(1,128)}', space=vmem, size = 0x12000, scoped, tag = 'internal scratch']
  %s0 = inlined_call_operand.vmem [shape: f32[4,64,16], index: 0, kind: input, shape index: {}]
  %s1 = inlined_call_operand.vmem [shape: f32[64,2], index: 1, kind: input, shape index: {}]
  %s2 = inlined_call_operand.vmem [shape: f32[2,64], index: 2, kind: input, shape index: {}]
  %s3 = inlined_call_operand.vmem [shape: f32[4,64,16], index: 3, kind: output, shape index: {}]
  %s4 = sld [smem:[#allocation0]]
  $region22: #{se_layer.1} parent=0
    _
  %s6 = ssub.s32 1, %s4
  %s7 = scalar_select 0, %s6, %s4
  // Predicated region
  $region2: #{se_layer.1} parent=0 // pred_check
    _
  $region3: #{se_layer.1} parent=0 // pred_check_branch
    %9 = sbr.rel (0) target = $region5
  $region4: #{se_layer.1} parent=0 // pred_region
    _
  $region5: #{se_layer.1} parent=0 // pred_fallthru
    _
  // Predicated region
  $region6: #{se_layer.1} parent=0 // pred_check
    _
  $region7: #{se_layer.1} parent=0 // pred_check_branch
    %11 = sbr.rel (0) target = $region9
  $region8: #{se_layer.1} parent=0 // pred_region
    _
  $region9: #{se_layer.1} parent=0 // pred_fallthru
    _
  // Predicated region
  $region10: #{se_layer.1} parent=0 // pred_check
    _
  $region11: #{se_layer.1} parent=0 // pred_check_branch
    %13 = sbr.rel (0) target = $region13
  $region12: #{se_layer.1} parent=0 // pred_region
    _
  $region13: #{se_layer.1} parent=0 // pred_fallthru
    _
  %v14 = vld [vmem:[%s0] sm:$0xff]
  %v15 = vld [vmem:[%s0 + $0x8] sm:$0xff]
  %v16 = vld [vmem:[%s0 + $0x10] sm:$0xff]
  %v17 = vld [vmem:[%s0 + $0x18] sm:$0xff]
  %v18 = vld [vmem:[%s0 + $0x20] sm:$0xff]
  %v19 = vld [vmem:[%s0 + $0x28] sm:$0xff]
  %v20 = vld [vmem:[%s0 + $0x30] sm:$0xff]
  %v21 = vld [vmem:[%s0 + $0x38] sm:$0xff]
  %v22 = vld [vmem:[%s0 + $0x40] sm:$0xff]
  %v23 = vld [vmem:[%s0 + $0x48] sm:$0xff]
  %v24 = vld [vmem:[%s0 + $0x50] sm:$0xff]
  %v25 = vld [vmem:[%s0 + $0x58] sm:$0xff]
  %v26 = vld [vmem:[%s0 + $0x60] sm:$0xff]
  %v27 = vld [vmem:[%s0 + $0x68] sm:$0xff]
  %v28 = vld [vmem:[%s0 + $0x70] sm:$0xff]
  %v29 = vld [vmem:[%s0 + $0x78] sm:$0xff]
  %v30 = vld [vmem:[%s0 + $0x80] sm:$0xff]
  %v31 = vld [vmem:[%s0 + $0x88] sm:$0xff]
  %v32 = vld [vmem:[%s0 + $0x90] sm:$0xff]
  %v33 = vld [vmem:[%s0 + $0x98] sm:$0xff]
  %v34 = vld [vmem:[%s0 + $0xa0] sm:$0xff]
  %v35 = vld [vmem:[%s0 + $0xa8] sm:$0xff]
  %v36 = vld [vmem:[%s0 + $0xb0] sm:$0xff]
  %v37 = vld [vmem:[%s0 + $0xb8] sm:$0xff]
  %v38 = vld [vmem:[%s0 + $0xc0] sm:$0xff]
  %v39 = vld [vmem:[%s0 + $0xc8] sm:$0xff]
  %v40 = vld [vmem:[%s0 + $0xd0] sm:$0xff]
  %v41 = vld [vmem:[%s0 + $0xd8] sm:$0xff]
  %v42 = vld [vmem:[%s0 + $0xe0] sm:$0xff]
  %v43 = vld [vmem:[%s0 + $0xe8] sm:$0xff]
  %v44 = vld [vmem:[%s0 + $0xf0] sm:$0xff]
  %v45 = vld [vmem:[%s0 + $0xf8] sm:$0xff]
  %vm46 = vcmask 130048
  %v47 = vsel %vm46, %v14, 0.0
  %48 = vadd.xlane.f32.xlu0 %v47
  %v49 = vpop.xlane.xlu0 %48
  %v50 = vsel %vm46, %v15, 0.0
  %51 = vadd.xlane.f32.xlu0 %v50
  %v52 = vpop.xlane.xlu0 %51
  %v53 = vsel %vm46, %v16, 0.0
  %54 = vadd.xlane.f32.xlu0 %v53
  %v55 = vpop.xlane.xlu0 %54
  %v56 = vsel %vm46, %v17, 0.0
  %57 = vadd.xlane.f32.xlu0 %v56
  %v58 = vpop.xlane.xlu0 %57
  %v59 = vsel %vm46, %v18, 0.0
  %60 = vadd.xlane.f32.xlu0 %v59
  %v61 = vpop.xlane.xlu0 %60
  %v62 = vsel %vm46, %v19, 0.0
  %63 = vadd.xlane.f32.xlu0 %v62
  %v64 = vpop.xlane.xlu0 %63
  %v65 = vsel %vm46, %v20, 0.0
  %66 = vadd.xlane.f32.xlu0 %v65
  %v67 = vpop.xlane.xlu0 %66
  %v68 = vsel %vm46, %v21, 0.0
  %69 = vadd.xlane.f32.xlu0 %v68
  %v70 = vpop.xlane.xlu0 %69
  %v71 = vsel %vm46, %v22, 0.0
  %72 = vadd.xlane.f32.xlu0 %v71
  %v73 = vpop.xlane.xlu0 %72
  %v74 = vsel %vm46, %v23, 0.0
  %75 = vadd.xlane.f32.xlu0 %v74
  %v76 = vpop.xlane.xlu0 %75
  %v77 = vsel %vm46, %v24, 0.0
  %78 = vadd.xlane.f32.xlu0 %v77
  %v79 = vpop.xlane.xlu0 %78
  %v80 = vsel %vm46, %v25, 0.0
  %81 = vadd.xlane.f32.xlu0 %v80
  %v82 = vpop.xlane.xlu0 %81
  %v83 = vsel %vm46, %v26, 0.0
  %84 = vadd.xlane.f32.xlu0 %v83
  %v85 = vpop.xlane.xlu0 %84
  %v86 = vsel %vm46, %v27, 0.0
  %87 = vadd.xlane.f32.xlu0 %v86
  %v88 = vpop.xlane.xlu0 %87
  %v89 = vsel %vm46, %v28, 0.0
  %90 = vadd.xlane.f32.xlu0 %v89
  %v91 = vpop.xlane.xlu0 %90
  %v92 = vsel %vm46, %v29, 0.0
  %93 = vadd.xlane.f32.xlu0 %v92
  %v94 = vpop.xlane.xlu0 %93
  %v95 = vsel %vm46, %v30, 0.0
  %96 = vadd.xlane.f32.xlu0 %v95
  %v97 = vpop.xlane.xlu0 %96
  %v98 = vsel %vm46, %v31, 0.0
  %99 = vadd.xlane.f32.xlu0 %v98
  %v100 = vpop.xlane.xlu0 %99
  %v101 = vsel %vm46, %v32, 0.0
  %102 = vadd.xlane.f32.xlu0 %v101
  %v103 = vpop.xlane.xlu0 %102
  %v104 = vsel %vm46, %v33, 0.0
  %105 = vadd.xlane.f32.xlu0 %v104
  %v106 = vpop.xlane.xlu0 %105
  %v107 = vsel %vm46, %v34, 0.0
  %108 = vadd.xlane.f32.xlu0 %v107
  %v109 = vpop.xlane.xlu0 %108
  %v110 = vsel %vm46, %v35, 0.0
  %111 = vadd.xlane.f32.xlu0 %v110
  %v112 = vpop.xlane.xlu0 %111
  %v113 = vsel %vm46, %v36, 0.0
  %114 = vadd.xlane.f32.xlu0 %v113
  %v115 = vpop.xlane.xlu0 %114
  %v116 = vsel %vm46, %v37, 0.0
  %117 = vadd.xlane.f32.xlu0 %v116
  %v118 = vpop.xlane.xlu0 %117
  %v119 = vsel %vm46, %v38, 0.0
  %120 = vadd.xlane.f32.xlu0 %v119
  %v121 = vpop.xlane.xlu0 %120
  %v122 = vsel %vm46, %v39, 0.0
  %123 = vadd.xlane.f32.xlu0 %v122
  %v124 = vpop.xlane.xlu0 %123
  %v125 = vsel %vm46, %v40, 0.0
  %126 = vadd.xlane.f32.xlu0 %v125
  %v127 = vpop.xlane.xlu0 %126
  %v128 = vsel %vm46, %v41, 0.0
  %129 = vadd.xlane.f32.xlu0 %v128
  %v130 = vpop.xlane.xlu0 %129
  %v131 = vsel %vm46, %v42, 0.0
  %132 = vadd.xlane.f32.xlu0 %v131
  %v133 = vpop.xlane.xlu0 %132
  %v134 = vsel %vm46, %v43, 0.0
  %135 = vadd.xlane.f32.xlu0 %v134
  %v136 = vpop.xlane.xlu0 %135
  %v137 = vsel %vm46, %v44, 0.0
  %138 = vadd.xlane.f32.xlu0 %v137
  %v139 = vpop.xlane.xlu0 %138
  %v140 = vsel %vm46, %v45, 0.0
  %141 = vadd.xlane.f32.xlu0 %v140
  %v142 = vpop.xlane.xlu0 %141
  %v143 = vrcp.pop 16.0
  %v144 = vmul.f32 %v49, %v143
  %v145 = vmul.f32 %v52, %v143
  %v146 = vmul.f32 %v55, %v143
  %v147 = vmul.f32 %v58, %v143
  %v148 = vmul.f32 %v61, %v143
  %v149 = vmul.f32 %v64, %v143
  %v150 = vmul.f32 %v67, %v143
  %v151 = vmul.f32 %v70, %v143
  %v152 = vmul.f32 %v73, %v143
  %v153 = vmul.f32 %v76, %v143
  %v154 = vmul.f32 %v79, %v143
  %v155 = vmul.f32 %v82, %v143
  %v156 = vmul.f32 %v85, %v143
  %v157 = vmul.f32 %v88, %v143
  %v158 = vmul.f32 %v91, %v143
  %v159 = vmul.f32 %v94, %v143
  %v160 = vmul.f32 %v97, %v143
  %v161 = vmul.f32 %v100, %v143
  %v162 = vmul.f32 %v103, %v143
  %v163 = vmul.f32 %v106, %v143
  %v164 = vmul.f32 %v109, %v143
  %v165 = vmul.f32 %v112, %v143
  %v166 = vmul.f32 %v115, %v143
  %v167 = vmul.f32 %v118, %v143
  %v168 = vmul.f32 %v121, %v143
  %v169 = vmul.f32 %v124, %v143
  %v170 = vmul.f32 %v127, %v143
  %v171 = vmul.f32 %v130, %v143
  %v172 = vmul.f32 %v133, %v143
  %v173 = vmul.f32 %v136, %v143
  %v174 = vmul.f32 %v139, %v143
  %v175 = vmul.f32 %v142, %v143
  %v176 = vld [vmem:[%s1] sm:$0xff]
  %v177 = vld [vmem:[%s1 + $0x8] sm:$0xff]
  %v178 = vld [vmem:[%s1 + $0x10] sm:$0xff]
  %v179 = vld [vmem:[%s1 + $0x18] sm:$0xff]
  %v180 = vld [vmem:[%s1 + $0x20] sm:$0xff]
  %v181 = vld [vmem:[%s1 + $0x28] sm:$0xff]
  %v182 = vld [vmem:[%s1 + $0x30] sm:$0xff]
  %v183 = vld [vmem:[%s1 + $0x38] sm:$0xff]
  %v216 = vlaneseq
  %v217 = vand.u32 %v216, 127
  %v218 = vlaneseq
  %v219 = vshrl.u32 %v218, 7
  %v220 = vsub.s32 %v217, %v219
  %v221 = vrot.slane %v144, %v220
  %v222 = vadd.s32 %v217, 4294967288
  %v223 = vlaneseq
  %v224 = vshrl.u32 %v223, 7
  %v225 = vsub.s32 %v222, %v224
  %v226 = vrot.slane %v145, %v225
  %vm227 = vcmask 130112
  %v228 = vsel %vm227, %v226, %v221
  %v229 = vadd.s32 %v217, 4294967280
  %v230 = vlaneseq
  %v231 = vshrl.u32 %v230, 7
  %v232 = vsub.s32 %v229, %v231
  %v233 = vrot.slane %v146, %v232
  %vm234 = vcmask 195712
  %v235 = vsel %vm234, %v233, %v228
  %v236 = vadd.s32 %v217, 4294967272
  %v237 = vlaneseq
  %v238 = vshrl.u32 %v237, 7
  %v239 = vsub.s32 %v236, %v238
  %v240 = vrot.slane %v147, %v239
  %vm241 = vcmask 261312
  %v242 = vsel %vm241, %v240, %v235
  %v243 = vadd.s32 %v217, 4294967264
  %v244 = vlaneseq
  %v245 = vshrl.u32 %v244, 7
  %v246 = vsub.s32 %v243, %v245
  %v247 = vrot.slane %v148, %v246
  %vm248 = vcmask 326912
  %v249 = vsel %vm248, %v247, %v242
  %v250 = vadd.s32 %v217, 4294967256
  %v251 = vlaneseq
  %v252 = vshrl.u32 %v251, 7
  %v253 = vsub.s32 %v250, %v252
  %v254 = vrot.slane %v149, %v253
  %vm255 = vcmask 392512
  %v256 = vsel %vm255, %v254, %v249
  %v257 = vadd.s32 %v217, 4294967248
  %v258 = vlaneseq
  %v259 = vshrl.u32 %v258, 7
  %v260 = vsub.s32 %v257, %v259
  %v261 = vrot.slane %v150, %v260
  %vm262 = vcmask 458112
  %v263 = vsel %vm262, %v261, %v256
  %v264 = vadd.s32 %v217, 4294967240
  %v265 = vlaneseq
  %v266 = vshrl.u32 %v265, 7
  %v267 = vsub.s32 %v264, %v266
  %v268 = vrot.slane %v151, %v267
  %vm269 = vcmask 523712
  %v270 = vsel %vm269, %v268, %v263
  %v271 = vlaneseq
  %v272 = vshrl.u32 %v271, 7
  %v273 = vsub.s32 %v217, %v272
  %v274 = vrot.slane %v152, %v273
  %v275 = vlaneseq
  %v276 = vshrl.u32 %v275, 7
  %v277 = vsub.s32 %v222, %v276
  %v278 = vrot.slane %v153, %v277
  %v279 = vsel %vm227, %v278, %v274
  %v280 = vlaneseq
  %v281 = vshrl.u32 %v280, 7
  %v282 = vsub.s32 %v229, %v281
  %v283 = vrot.slane %v154, %v282
  %v284 = vsel %vm234, %v283, %v279
  %v285 = vlaneseq
  %v286 = vshrl.u32 %v285, 7
  %v287 = vsub.s32 %v236, %v286
  %v288 = vrot.slane %v155, %v287
  %v289 = vsel %vm241, %v288, %v284
  %v290 = vlaneseq
  %v291 = vshrl.u32 %v290, 7
  %v292 = vsub.s32 %v243, %v291
  %v293 = vrot.slane %v156, %v292
  %v294 = vsel %vm248, %v293, %v289
  %v295 = vlaneseq
  %v296 = vshrl.u32 %v295, 7
  %v297 = vsub.s32 %v250, %v296
  %v298 = vrot.slane %v157, %v297
  %v299 = vsel %vm255, %v298, %v294
  %v300 = vlaneseq
  %v301 = vshrl.u32 %v300, 7
  %v302 = vsub.s32 %v257, %v301
  %v303 = vrot.slane %v158, %v302
  %v304 = vsel %vm262, %v303, %v299
  %v305 = vlaneseq
  %v306 = vshrl.u32 %v305, 7
  %v307 = vsub.s32 %v264, %v306
  %v308 = vrot.slane %v159, %v307
  %v309 = vsel %vm269, %v308, %v304
  %v310 = vlaneseq
  %v311 = vshrl.u32 %v310, 7
  %v312 = vsub.s32 %v217, %v311
  %v313 = vrot.slane %v160, %v312
  %v314 = vlaneseq
  %v315 = vshrl.u32 %v314, 7
  %v316 = vsub.s32 %v222, %v315
  %v317 = vrot.slane %v161, %v316
  %v318 = vsel %vm227, %v317, %v313
  %v319 = vlaneseq
  %v320 = vshrl.u32 %v319, 7
  %v321 = vsub.s32 %v229, %v320
  %v322 = vrot.slane %v162, %v321
  %v323 = vsel %vm234, %v322, %v318
  %v324 = vlaneseq
  %v325 = vshrl.u32 %v324, 7
  %v326 = vsub.s32 %v236, %v325
  %v327 = vrot.slane %v163, %v326
  %v328 = vsel %vm241, %v327, %v323
  %v329 = vlaneseq
  %v330 = vshrl.u32 %v329, 7
  %v331 = vsub.s32 %v243, %v330
  %v332 = vrot.slane %v164, %v331
  %v333 = vsel %vm248, %v332, %v328
  %v334 = vlaneseq
  %v335 = vshrl.u32 %v334, 7
  %v336 = vsub.s32 %v250, %v335
  %v337 = vrot.slane %v165, %v336
  %v338 = vsel %vm255, %v337, %v333
  %v339 = vlaneseq
  %v340 = vshrl.u32 %v339, 7
  %v341 = vsub.s32 %v257, %v340
  %v342 = vrot.slane %v166, %v341
  %v343 = vsel %vm262, %v342, %v338
  %v344 = vlaneseq
  %v345 = vshrl.u32 %v344, 7
  %v346 = vsub.s32 %v264, %v345
  %v347 = vrot.slane %v167, %v346
  %v348 = vsel %vm269, %v347, %v343
  %v349 = vlaneseq
  %v350 = vshrl.u32 %v349, 7
  %v351 = vsub.s32 %v217, %v350
  %v352 = vrot.slane %v168, %v351
  %v353 = vlaneseq
  %v354 = vshrl.u32 %v353, 7
  %v355 = vsub.s32 %v222, %v354
  %v356 = vrot.slane %v169, %v355
  %v357 = vsel %vm227, %v356, %v352
  %v358 = vlaneseq
  %v359 = vshrl.u32 %v358, 7
  %v360 = vsub.s32 %v229, %v359
  %v361 = vrot.slane %v170, %v360
  %v362 = vsel %vm234, %v361, %v357
  %v363 = vlaneseq
  %v364 = vshrl.u32 %v363, 7
  %v365 = vsub.s32 %v236, %v364
  %v366 = vrot.slane %v171, %v365
  %v367 = vsel %vm241, %v366, %v362
  %v368 = vlaneseq
  %v369 = vshrl.u32 %v368, 7
  %v370 = vsub.s32 %v243, %v369
  %v371 = vrot.slane %v172, %v370
  %v372 = vsel %vm248, %v371, %v367
  %v373 = vlaneseq
  %v374 = vshrl.u32 %v373, 7
  %v375 = vsub.s32 %v250, %v374
  %v376 = vrot.slane %v173, %v375
  %v377 = vsel %vm255, %v376, %v372
  %v378 = vlaneseq
  %v379 = vshrl.u32 %v378, 7
  %v380 = vsub.s32 %v257, %v379
  %v381 = vrot.slane %v174, %v380
  %v382 = vsel %vm262, %v381, %v377
  %v383 = vlaneseq
  %v384 = vshrl.u32 %v383, 7
  %v385 = vsub.s32 %v264, %v384
  %v386 = vrot.slane %v175, %v385
  %v387 = vsel %vm269, %v386, %v382
  %vm388 = vcmask 1041409
  %v389 = vsel %vm388, %v309, %v270
  %vm390 = vcmask 1042434
  %v391 = vsel %vm390, %v348, %v389
  %vm392 = vcmask 1043459
  %v393 = vsel %vm392, %v387, %v391
  %vm394 = vcmask 523264
  %v395 = vsel %vm394, %v393, 0
  %397 = vmatprep.subr.mxu0 0.0
  %398 = vmatpush1.msra.mxu0 0.0
  %399 = vmatprep.subr.mxu0 0.0
  %400 = vmatpush1.msra.mxu0 0.0
  %401 = vmatprep.subr.mxu0 0.0
  %402 = vmatpush1.msra.mxu0 0.0
  %403 = vmatprep.subr.mxu0 0.0
  %404 = vmatpush1.msra.mxu0 0.0
  %405 = vmatprep.subr.mxu0 0.0
  %406 = vmatpush1.msra.mxu0 0.0
  %407 = vmatprep.subr.mxu0 0.0
  %408 = vmatpush1.msra.mxu0 0.0
  %409 = vmatprep.subr.mxu0 0.0
  %410 = vmatpush1.msra.mxu0 0.0
  %411 = vmatprep.subr.mxu0 0.0
  %412 = vmatpush1.msra.mxu0 0.0
  %413 = vmatprep.subr.mxu0 0.0
  %414 = vmatpush1.msra.mxu0 %v183
  %415 = vmatprep.subr.mxu0 0.0
  %416 = vmatpush1.msra.mxu0 %v182
  %417 = vmatprep.subr.mxu0 0.0
  %418 = vmatpush1.msra.mxu0 %v181
  %419 = vmatprep.subr.mxu0 0.0
  %420 = vmatpush1.msra.mxu0 %v180
  %421 = vmatprep.subr.mxu0 0.0
  %422 = vmatpush1.msra.mxu0 %v179
  %423 = vmatprep.subr.mxu0 0.0
  %424 = vmatpush1.msra.mxu0 %v178
  %425 = vmatprep.subr.mxu0 0.0
  %426 = vmatpush1.msra.mxu0 %v177
  %427 = vmatprep.subr.mxu0 0.0
  %428 = vmatpush1.msra.mxu0 %v176
  %429 = vmatprep.subr.mxu0 0.0
  %430 = vmatpush2.msra.mxu0 0.0
  %431 = vmatprep.subr.mxu0 0.0
  %432 = vmatpush2.msra.mxu0 0.0
  %433 = vmatprep.subr.mxu0 0.0
  %434 = vmatpush2.msra.mxu0 0.0
  %435 = vmatprep.subr.mxu0 0.0
  %436 = vmatpush2.msra.mxu0 0.0
  %437 = vmatprep.subr.mxu0 0.0
  %438 = vmatpush2.msra.mxu0 0.0
  %439 = vmatprep.subr.mxu0 0.0
  %440 = vmatpush2.msra.mxu0 0.0
  %441 = vmatprep.subr.mxu0 0.0
  %442 = vmatpush2.msra.mxu0 0.0
  %443 = vmatprep.subr.mxu0 0.0
  %444 = vmatpush2.msra.mxu0 0.0
  %445 = vmatprep.subr.mxu0 0.0
  %446 = vmatpush2.msra.mxu0 0.0
  %447 = vmatprep.subr.mxu0 0.0
  %448 = vmatpush2.msra.mxu0 0.0
  %449 = vmatprep.subr.mxu0 0.0
  %450 = vmatpush2.msra.mxu0 0.0
  %451 = vmatprep.subr.mxu0 0.0
  %452 = vmatpush2.msra.mxu0 0.0
  %453 = vmatprep.subr.mxu0 0.0
  %454 = vmatpush2.msra.mxu0 0.0
  %455 = vmatprep.subr.mxu0 0.0
  %456 = vmatpush2.msra.mxu0 0.0
  %457 = vmatprep.subr.mxu0 0.0
  %458 = vmatpush2.msra.mxu0 0.0
  %459 = vmatprep.subr.mxu0 0.0
  %460 = vmatpush2.msra.mxu0 0.0
  %461 = vmatprep.mubr.f32.mxu0 0.0
  %462 = vmatmul.mubr.f32.gmra.mxu0 %v395
  %v463 = vpop.f32.mrf.mxu0
  %v464 = vadd.f32 0.0, %v463
  %v465 = vpop.f32.mrf.mxu0
  %466 = vdwg.mxu0
  %v467 = vmax.f32 %v464, 0.0
  %v468 = vld [vmem:[%s2] sm:$0x3]
  %vm469 = vcmask 15360
  %v471 = vsel %vm469, %v467, 0
  %vm473 = vcmask 1041408
  %v475 = vsel %vm473, %v468, 0
  %477 = vmatprep.subr.mxu0 0.0
  %478 = vmatpush1.msra.mxu0 0.0
  %479 = vmatprep.subr.mxu0 0.0
  %480 = vmatpush1.msra.mxu0 0.0
  %481 = vmatprep.subr.mxu0 0.0
  %482 = vmatpush1.msra.mxu0 0.0
  %483 = vmatprep.subr.mxu0 0.0
  %484 = vmatpush1.msra.mxu0 0.0
  %485 = vmatprep.subr.mxu0 0.0
  %486 = vmatpush1.msra.mxu0 0.0
  %487 = vmatprep.subr.mxu0 0.0
  %488 = vmatpush1.msra.mxu0 0.0
  %489 = vmatprep.subr.mxu0 0.0
  %490 = vmatpush1.msra.mxu0 0.0
  %491 = vmatprep.subr.mxu0 0.0
  %492 = vmatpush1.msra.mxu0 0.0
  %493 = vmatprep.subr.mxu0 0.0
  %494 = vmatpush1.msra.mxu0 0.0
  %495 = vmatprep.subr.mxu0 0.0
  %496 = vmatpush1.msra.mxu0 0.0
  %497 = vmatprep.subr.mxu0 0.0
  %498 = vmatpush1.msra.mxu0 0.0
  %499 = vmatprep.subr.mxu0 0.0
  %500 = vmatpush1.msra.mxu0 0.0
  %501 = vmatprep.subr.mxu0 0.0
  %502 = vmatpush1.msra.mxu0 0.0
  %503 = vmatprep.subr.mxu0 0.0
  %504 = vmatpush1.msra.mxu0 0.0
  %505 = vmatprep.subr.mxu0 0.0
  %506 = vmatpush1.msra.mxu0 0.0
  %507 = vmatprep.subr.mxu0 0.0
  %508 = vmatpush1.msra.mxu0 %v475
  %509 = vmatprep.subr.mxu0 0.0
  %510 = vmatpush2.msra.mxu0 0.0
  %511 = vmatprep.subr.mxu0 0.0
  %512 = vmatpush2.msra.mxu0 0.0
  %513 = vmatprep.subr.mxu0 0.0
  %514 = vmatpush2.msra.mxu0 0.0
  %515 = vmatprep.subr.mxu0 0.0
  %516 = vmatpush2.msra.mxu0 0.0
  %517 = vmatprep.subr.mxu0 0.0
  %518 = vmatpush2.msra.mxu0 0.0
  %519 = vmatprep.subr.mxu0 0.0
  %520 = vmatpush2.msra.mxu0 0.0
  %521 = vmatprep.subr.mxu0 0.0
  %522 = vmatpush2.msra.mxu0 0.0
  %523 = vmatprep.subr.mxu0 0.0
  %524 = vmatpush2.msra.mxu0 0.0
  %525 = vmatprep.subr.mxu0 0.0
  %526 = vmatpush2.msra.mxu0 0.0
  %527 = vmatprep.subr.mxu0 0.0
  %528 = vmatpush2.msra.mxu0 0.0
  %529 = vmatprep.subr.mxu0 0.0
  %530 = vmatpush2.msra.mxu0 0.0
  %531 = vmatprep.subr.mxu0 0.0
  %532 = vmatpush2.msra.mxu0 0.0
  %533 = vmatprep.subr.mxu0 0.0
  %534 = vmatpush2.msra.mxu0 0.0
  %535 = vmatprep.subr.mxu0 0.0
  %536 = vmatpush2.msra.mxu0 0.0
  %537 = vmatprep.subr.mxu0 0.0
  %538 = vmatpush2.msra.mxu0 0.0
  %539 = vmatprep.subr.mxu0 0.0
  %540 = vmatpush2.msra.mxu0 0.0
  %541 = vmatprep.mubr.f32.mxu0 0.0
  %542 = vmatmul.mubr.f32.gmra.mxu0 %v471
  %v543 = vpop.f32.mrf.mxu0
  %v544 = vadd.f32 0.0, %v543
  %v545 = vpop.f32.mrf.mxu0
  %546 = vdwg.mxu0
  %v547 = vxor.u32 %v544, 2147483648
  %v548 = vmul.f32 %v547, 1.442695
  %v549 = vpow.pop %v548
  %v550 = vadd.f32 %v549, 1.0
  %v551 = vrcp.pop %v550
  %v552 = vmul.f32 1.0, %v551
  %v553 = vlaneseq
  %v554 = vshrl.u32 %v553, 7
  %v555 = vsub.s32 0, %v554
  %v556 = vrot.slane %v552, %v555
  %558 = vbcast.lane.b32.xlu0 %v556, 256
  %v559 = vpop.permute.xlu0 %558
  %s561 = sor.u32 256, 8
  %562 = vbcast.lane.b32.xlu0 %v556, %s561
  %v563 = vpop.permute.xlu0 %562
  %s565 = sor.u32 256, 16
  %566 = vbcast.lane.b32.xlu0 %v556, %s565
  %v567 = vpop.permute.xlu0 %566
  %s569 = sor.u32 256, 24
  %570 = vbcast.lane.b32.xlu0 %v556, %s569
  %v571 = vpop.permute.xlu0 %570
  %s573 = sor.u32 256, 32
  %574 = vbcast.lane.b32.xlu0 %v556, %s573
  %v575 = vpop.permute.xlu0 %574
  %s577 = sor.u32 256, 40
  %578 = vbcast.lane.b32.xlu0 %v556, %s577
  %v579 = vpop.permute.xlu0 %578
  %s581 = sor.u32 256, 48
  %582 = vbcast.lane.b32.xlu0 %v556, %s581
  %v583 = vpop.permute.xlu0 %582
  %s585 = sor.u32 256, 56
  %586 = vbcast.lane.b32.xlu0 %v556, %s585
  %v587 = vpop.permute.xlu0 %586
  %v588 = vlaneseq
  %v589 = vshrl.u32 %v588, 7
  %v590 = vsub.s32 1, %v589
  %v591 = vrot.slane %v552, %v590
  %593 = vbcast.lane.b32.xlu0 %v591, 256
  %v594 = vpop.permute.xlu0 %593
  %s596 = sor.u32 256, 8
  %597 = vbcast.lane.b32.xlu0 %v591, %s596
  %v598 = vpop.permute.xlu0 %597
  %s600 = sor.u32 256, 16
  %601 = vbcast.lane.b32.xlu0 %v591, %s600
  %v602 = vpop.permute.xlu0 %601
  %s604 = sor.u32 256, 24
  %605 = vbcast.lane.b32.xlu0 %v591, %s604
  %v606 = vpop.permute.xlu0 %605
  %s608 = sor.u32 256, 32
  %609 = vbcast.lane.b32.xlu0 %v591, %s608
  %v610 = vpop.permute.xlu0 %609
  %s612 = sor.u32 256, 40
  %613 = vbcast.lane.b32.xlu0 %v591, %s612
  %v614 = vpop.permute.xlu0 %613
  %s616 = sor.u32 256, 48
  %617 = vbcast.lane.b32.xlu0 %v591, %s616
  %v618 = vpop.permute.xlu0 %617
  %s620 = sor.u32 256, 56
  %621 = vbcast.lane.b32.xlu0 %v591, %s620
  %v622 = vpop.permute.xlu0 %621
  %v623 = vlaneseq
  %v624 = vshrl.u32 %v623, 7
  %v625 = vsub.s32 2, %v624
  %v626 = vrot.slane %v552, %v625
  %628 = vbcast.lane.b32.xlu0 %v626, 256
  %v629 = vpop.permute.xlu0 %628
  %s631 = sor.u32 256, 8
  %632 = vbcast.lane.b32.xlu0 %v626, %s631
  %v633 = vpop.permute.xlu0 %632
  %s635 = sor.u32 256, 16
  %636 = vbcast.lane.b32.xlu0 %v626, %s635
  %v637 = vpop.permute.xlu0 %636
  %s639 = sor.u32 256, 24
  %640 = vbcast.lane.b32.xlu0 %v626, %s639
  %v641 = vpop.permute.xlu0 %640
  %s643 = sor.u32 256, 32
  %644 = vbcast.lane.b32.xlu0 %v626, %s643
  %v645 = vpop.permute.xlu0 %644
  %s647 = sor.u32 256, 40
  %648 = vbcast.lane.b32.xlu0 %v626, %s647
  %v649 = vpop.permute.xlu0 %648
  %s651 = sor.u32 256, 48
  %652 = vbcast.lane.b32.xlu0 %v626, %s651
  %v653 = vpop.permute.xlu0 %652
  %s655 = sor.u32 256, 56
  %656 = vbcast.lane.b32.xlu0 %v626, %s655
  %v657 = vpop.permute.xlu0 %656
  %v658 = vlaneseq
  %v659 = vshrl.u32 %v658, 7
  %v660 = vsub.s32 3, %v659
  %v661 = vrot.slane %v552, %v660
  %663 = vbcast.lane.b32.xlu0 %v661, 256
  %v664 = vpop.permute.xlu0 %663
  %s666 = sor.u32 256, 8
  %667 = vbcast.lane.b32.xlu0 %v661, %s666
  %v668 = vpop.permute.xlu0 %667
  %s670 = sor.u32 256, 16
  %671 = vbcast.lane.b32.xlu0 %v661, %s670
  %v672 = vpop.permute.xlu0 %671
  %s674 = sor.u32 256, 24
  %675 = vbcast.lane.b32.xlu0 %v661, %s674
  %v676 = vpop.permute.xlu0 %675
  %s678 = sor.u32 256, 32
  %679 = vbcast.lane.b32.xlu0 %v661, %s678
  %v680 = vpop.permute.xlu0 %679
  %s682 = sor.u32 256, 40
  %683 = vbcast.lane.b32.xlu0 %v661, %s682
  %v684 = vpop.permute.xlu0 %683
  %s686 = sor.u32 256, 48
  %687 = vbcast.lane.b32.xlu0 %v661, %s686
  %v688 = vpop.permute.xlu0 %687
  %s690 = sor.u32 256, 56
  %691 = vbcast.lane.b32.xlu0 %v661, %s690
  %v692 = vpop.permute.xlu0 %691
  %v693 = vmul.f32 %v14, %v559
  %v694 = vmul.f32 %v15, %v563
  %v695 = vmul.f32 %v16, %v567
  %v696 = vmul.f32 %v17, %v571
  %v697 = vmul.f32 %v18, %v575
  %v698 = vmul.f32 %v19, %v579
  %v699 = vmul.f32 %v20, %v583
  %v700 = vmul.f32 %v21, %v587
  %v701 = vmul.f32 %v22, %v594
  %v702 = vmul.f32 %v23, %v598
  %v703 = vmul.f32 %v24, %v602
  %v704 = vmul.f32 %v25, %v606
  %v705 = vmul.f32 %v26, %v610
  %v706 = vmul.f32 %v27, %v614
  %v707 = vmul.f32 %v28, %v618
  %v708 = vmul.f32 %v29, %v622
  %v709 = vmul.f32 %v30, %v629
  %v710 = vmul.f32 %v31, %v633
  %v711 = vmul.f32 %v32, %v637
  %v712 = vmul.f32 %v33, %v641
  %v713 = vmul.f32 %v34, %v645
  %v714 = vmul.f32 %v35, %v649
  %v715 = vmul.f32 %v36, %v653
  %v716 = vmul.f32 %v37, %v657
  %v717 = vmul.f32 %v38, %v664
  %v718 = vmul.f32 %v39, %v668
  %v719 = vmul.f32 %v40, %v672
  %v720 = vmul.f32 %v41, %v676
  %v721 = vmul.f32 %v42, %v680
  %v722 = vmul.f32 %v43, %v684
  %v723 = vmul.f32 %v44, %v688
  %v724 = vmul.f32 %v45, %v692
  %725 = vst.msk [vmem:[%s3] sm:$0xff] %vm46, %v693
  %726 = vst.msk [vmem:[%s3 + $0x8] sm:$0xff] %vm46, %v694
  %727 = vst.msk [vmem:[%s3 + $0x10] sm:$0xff] %vm46, %v695
  %728 = vst.msk [vmem:[%s3 + $0x18] sm:$0xff] %vm46, %v696
  %729 = vst.msk [vmem:[%s3 + $0x20] sm:$0xff] %vm46, %v697
  %730 = vst.msk [vmem:[%s3 + $0x28] sm:$0xff] %vm46, %v698
  %731 = vst.msk [vmem:[%s3 + $0x30] sm:$0xff] %vm46, %v699
  %732 = vst.msk [vmem:[%s3 + $0x38] sm:$0xff] %vm46, %v700
  %733 = vst.msk [vmem:[%s3 + $0x40] sm:$0xff] %vm46, %v701
  %734 = vst.msk [vmem:[%s3 + $0x48] sm:$0xff] %vm46, %v702
  %735 = vst.msk [vmem:[%s3 + $0x50] sm:$0xff] %vm46, %v703
  %736 = vst.msk [vmem:[%s3 + $0x58] sm:$0xff] %vm46, %v704
  %737 = vst.msk [vmem:[%s3 + $0x60] sm:$0xff] %vm46, %v705
  %738 = vst.msk [vmem:[%s3 + $0x68] sm:$0xff] %vm46, %v706
  %739 = vst.msk [vmem:[%s3 + $0x70] sm:$0xff] %vm46, %v707
  %740 = vst.msk [vmem:[%s3 + $0x78] sm:$0xff] %vm46, %v708
  %741 = vst.msk [vmem:[%s3 + $0x80] sm:$0xff] %vm46, %v709
  %742 = vst.msk [vmem:[%s3 + $0x88] sm:$0xff] %vm46, %v710
  %743 = vst.msk [vmem:[%s3 + $0x90] sm:$0xff] %vm46, %v711
  %744 = vst.msk [vmem:[%s3 + $0x98] sm:$0xff] %vm46, %v712
  %745 = vst.msk [vmem:[%s3 + $0xa0] sm:$0xff] %vm46, %v713
  %746 = vst.msk [vmem:[%s3 + $0xa8] sm:$0xff] %vm46, %v714
  %747 = vst.msk [vmem:[%s3 + $0xb0] sm:$0xff] %vm46, %v715
  %748 = vst.msk [vmem:[%s3 + $0xb8] sm:$0xff] %vm46, %v716
  %749 = vst.msk [vmem:[%s3 + $0xc0] sm:$0xff] %vm46, %v717
  %750 = vst.msk [vmem:[%s3 + $0xc8] sm:$0xff] %vm46, %v718
  %751 = vst.msk [vmem:[%s3 + $0xd0] sm:$0xff] %vm46, %v719
  %752 = vst.msk [vmem:[%s3 + $0xd8] sm:$0xff] %vm46, %v720
  %753 = vst.msk [vmem:[%s3 + $0xe0] sm:$0xff] %vm46, %v721
  %754 = vst.msk [vmem:[%s3 + $0xe8] sm:$0xff] %vm46, %v722
  %755 = vst.msk [vmem:[%s3 + $0xf0] sm:$0xff] %vm46, %v723
  %756 = vst.msk [vmem:[%s3 + $0xf8] sm:$0xff] %vm46, %v724
  // Predicated region
  $region14: #{se_layer.1} parent=0 // pred_check
    _
  $region15: #{se_layer.1} parent=0 // pred_check_branch
    %758 = sbr.rel (0) target = $region17
  $region16: #{se_layer.1} parent=0 // pred_region
    _
  $region17: #{se_layer.1} parent=0 // pred_fallthru
    _
  // Predicated region
  $region18: #{se_layer.1} parent=0 // pred_check
    _
  $region19: #{se_layer.1} parent=0 // pred_check_branch
    %760 = sbr.rel (0) target = $region21
  $region20: #{se_layer.1} parent=0 // pred_region
    _
  $region21: #{se_layer.1} parent=0 // pred_fallthru
    _

</llo_original>
